<compile_context>
chip_gen: v5e
topology: v5e:2x2
jax: 0.10.0
libtpu: 0.0.40
codegen_flags: <defaults>
</compile_context>

<pallas_src>
import functools

import jax
import jax.numpy as jnp
from jax.experimental import pallas as pl
from jax.experimental.pallas import tpu as pltpu


# --------------------------------------------------------------------------- #
# helpers                                                                      #
# --------------------------------------------------------------------------- #
def _round_up(x, m):
    return ((x + m - 1) // m) * m


def _tpu_flavor():
    """Coarse TPU-generation detection for tile/VMEM budgets."""
    try:
        kind = jax.devices()[0].device_kind.lower()
    except Exception:  # pragma: no cover - defensive
        kind = ""
    if "v7" in kind:
        return "v7"
    if "v6" in kind:
        return "v6"
    if "v5" in kind:
        return "v5"
    return "other"


def _ce_budgets():
    """(max logits-block bytes, vmem_limit_bytes, want >=2 batch tiles)."""
    flavor = _tpu_flavor()
    if flavor == "v7":
        # 64 MiB VMEM / TC: keep double-buffered logits <= ~16 MiB, and split
        # the batch so both TensorCores of the chip get a "parallel" tile.
        return 8 << 20, 32 << 20, True
    # v5e / v6e (128 MiB VMEM): larger blocks amortize the ~0.35us/step cost.
    return 12 << 20, 48 << 20, False


def _choose_ce_tiles(B, N, itemsize, max_block_bytes, want_two_batch_tiles):
    """Pick (tile_b, tile_n) so one logits block stays under max_block_bytes."""
    # Item tile: a multiple of 128 that divides N; full row if N isn't aligned.
    tile_n = N
    if N % 128 == 0:
        for cand in (4096, 2048, 1024, 512, 256, 128):
            if cand <= N and N % cand == 0:
                tile_n = cand
                break
    # Batch tile: rounded to the sublane packing of the input dtype.
    row_q = max(8, 8 * (4 // max(1, itemsize)))      # 8 for f32, 16 for bf16
    budget_rows = max(row_q,
                      (max_block_bytes // (tile_n * itemsize)) // row_q * row_q)
    nb = pl.cdiv(B, budget_rows)                     # even tiles, minimal pad
    tile_b = min(budget_rows, _round_up(pl.cdiv(B, nb), row_q))
    if want_two_batch_tiles and pl.cdiv(B, tile_b) < 2 and B > row_q:
        tile_b = _round_up(pl.cdiv(B, 2), row_q)     # megacore: >=2 batch tiles
    return tile_b, tile_n


# --------------------------------------------------------------------------- #
# CE: online logsumexp over the item axis (pure streaming inner loop)          #
# --------------------------------------------------------------------------- #
def _ce_lse_kernel(pos_ref, logits_ref, loss_ref, m_sc, l_sc):
    """Per-row cross-entropy:  logsumexp(logits) - logits[target].

    pos_ref    : (TB, 1)  f32      target logit per row (gathered in XLA)
    logits_ref : (TB, TN) any-dt   one item tile of logits (upcast in-kernel)
    loss_ref   : (TB, 1)  f32      per-row loss (written on the last item tile)
    m_sc/l_sc  : (TB, 1)  f32      running max / running sum-exp scratch
    """
    k = pl.program_id(1)

    @pl.when(k == 0)
    def _init():
        m_sc[...] = jnp.full_like(m_sc, -jnp.inf)
        l_sc[...] = jnp.zeros_like(l_sc)

    x = logits_ref[...].astype(jnp.float32)                     # (TB, TN)
    m_new = jnp.maximum(m_sc[...], jnp.max(x, axis=-1, keepdims=True))
    l_sc[...] = (jnp.exp(m_sc[...] - m_new) * l_sc[...]
                 + jnp.sum(jnp.exp(x - m_new), axis=-1, keepdims=True))
    m_sc[...] = m_new

    @pl.when(k == pl.num_programs(1) - 1)
    def _finalize():
        loss_ref[...] = (m_sc[...] + jnp.log(l_sc[...])
                         - pos_ref[...].astype(jnp.float32))


def _ce_per_row_loss(logits, target):
    B, N = logits.shape
    max_block_bytes, vmem_limit, want_two = _ce_budgets()
    tile_b, tile_n = _choose_ce_tiles(B, N, logits.dtype.itemsize,
                                      max_block_bytes, want_two)

    # Target logit gathered once in XLA (O(B)); kernel only does logsumexp.
    pos = jnp.take_along_axis(
        logits, target.reshape(B, 1).astype(jnp.int32), axis=-1
    ).astype(jnp.float32)                                       # (B, 1)

    # Pad the batch to a multiple of tile_b (cdiv-style, no divisor hunting).
    B_pad = _round_up(B, tile_b)
    if B_pad != B:
        logits = jnp.pad(logits, ((0, B_pad - B), (0, 0)))
        pos = jnp.pad(pos, ((0, B_pad - B), (0, 0)))

    rows = pl.pallas_call(
        _ce_lse_kernel,
        out_shape=jax.ShapeDtypeStruct((B_pad, 1), jnp.float32),
        grid_spec=pltpu.PrefetchScalarGridSpec(
            num_scalar_prefetch=0,
            grid=(B_pad // tile_b, N // tile_n),          # reduction axis last
            in_specs=[
                pl.BlockSpec((tile_b, 1), lambda i, k: (i, 0)),       # pos
                pl.BlockSpec((tile_b, tile_n), lambda i, k: (i, k)),  # logits
            ],
            out_specs=pl.BlockSpec((tile_b, 1), lambda i, k: (i, 0)),
            scratch_shapes=[pltpu.VMEM((tile_b, 1), jnp.float32)] * 2,
        ),
        compiler_params=pltpu.CompilerParams(
            dimension_semantics=("parallel", "arbitrary"),
            vmem_limit_bytes=vmem_limit),
    )(pos, logits)                           # logits streamed in native dtype
    return rows[:B]                          # drop padded rows


# --------------------------------------------------------------------------- #
# BPR / BCE: lane-dense pairwise loss on gathered (pos, neg) scores            #
# --------------------------------------------------------------------------- #
def _pair_loss_kernel(s_ref, loss_ref, *, loss_type):
    s = s_ref[...].astype(jnp.float32)             # (2, B): row0=pos, row1=neg
    pos = s[0:1, :]
    neg = s[1:2, :]
    if loss_type == "BPR":
        loss_ref[...] = -jax.nn.log_sigmoid(pos - neg)
    else:  # BCE; log(1 - sigmoid(x)) == log_sigmoid(-x)  (numerically stable)
        loss_ref[...] = -(jax.nn.log_sigmoid(pos) + jax.nn.log_sigmoid(-neg))


def _pair_per_row_loss(pos_score, neg_score, loss_type):
    B = pos_score.shape[0]
    # Lane-dense layout: (2, B) in, (1, B) out -> full 128-lane vregs.
    scores = jnp.stack([pos_score.reshape(B), neg_score.reshape(B)], axis=0)
    kernel = functools.partial(_pair_loss_kernel, loss_type=loss_type)
    return pl.pallas_call(
        kernel,
        out_shape=jax.ShapeDtypeStruct((1, B), jnp.float32),
        grid=(1,),
        in_specs=[pl.BlockSpec((2, B), lambda i: (0, 0))],
        out_specs=pl.BlockSpec((1, B), lambda i: (0, 0)),
    )(scores)


# --------------------------------------------------------------------------- #
# Module-level glue                                                            #
# --------------------------------------------------------------------------- #
class AbstractRecommenderPallas:
    """JAX/Pallas port of AbstractRecommender's loss machinery."""

    def __init__(self, num_items, loss_type, max_len):
        self.num_items = num_items
        self.loss_type = loss_type
        self.max_len = max_len

    def forward(self, data_dict):
        # TODO(synk): abstract (`pass`) in the reference module; subclasses define it.
        raise NotImplementedError

    def train_forward(self, key, data_dict):
        logits = self.forward(data_dict)
        return self.get_loss(key, data_dict, logits)

    def get_negative_items(self, key, input_item, target, num_samples=1,
                           num_rounds=16):
        """torch.multinomial over the (not-in-seq, not-target) uniform mask,
        done as uniform + rejection sampling — avoids a dense [B, num_items]
        probability matrix / scatter entirely."""
        B = input_item.shape[0]
        forbidden = jnp.concatenate(
            [input_item.astype(jnp.int32),
             target.reshape(B, 1).astype(jnp.int32)], axis=-1)      # (B, L+1)

        def one_sample(k):
            k0, kl = jax.random.split(k)
            cand0 = jax.random.randint(k0, (B,), 0, self.num_items, jnp.int32)
            ok0 = ~jnp.any(forbidden == cand0[:, None], axis=-1)

            def body(_, carry):
                kk, cur, ok = carry
                kk, sub = jax.random.split(kk)
                cand = jax.random.randint(sub, (B,), 0, self.num_items,
                                          jnp.int32)
                bad = jnp.any(forbidden == cand[:, None], axis=-1)
                cur = jnp.where((~ok) & (~bad), cand, cur)
                ok = ok | ~bad
                return kk, cur, ok

            _, neg, _ = jax.lax.fori_loop(0, num_rounds, body,
                                          (kl, cand0, ok0))
            # With num_items >> max_len the chance a row rejects every round is
            # negligible; such a row just keeps its last uniform draw.
            return neg

        keys = jax.random.split(key, num_samples)
        return jnp.stack([one_sample(k) for k in keys],
                         axis=-1).astype(jnp.int32)                 # (B, S)

    def get_loss(self, key, data_dict, logits):
        item_seq = data_dict["item_seq"]
        target = data_dict["target"]
        lt = self.loss_type.upper()
        if lt == "CE":
            rows = _ce_per_row_loss(logits, target)
        elif lt in ("BPR", "BCE"):
            neg = self.get_negative_items(key, item_seq, target, 1)  # (B, 1)
            # Only 2 of num_items scores per row are needed: gather them rather
            # than streaming the whole [B, num_items] logits through a kernel.
            pos_score = jnp.take_along_axis(logits, target.reshape(-1, 1), -1)
            neg_score = jnp.take_along_axis(logits, neg, -1)
            rows = _pair_per_row_loss(pos_score, neg_score, lt)
        else:
            return jnp.zeros((), jnp.float32)
        return jnp.mean(rows)                                        # scalar


# --------------------------------- main ------------------------------------ #
if __name__ == "__main__":
    B, MAX_LEN, NUM_ITEMS = 8, 8, 384        # 384 items -> 3 item tiles of 128

    key = jax.random.PRNGKey(0)
    k_logits, k_seq, k_tgt, k_neg = jax.random.split(key, 4)

    logits = jax.random.normal(k_logits, (B, NUM_ITEMS), jnp.float32)
    item_seq = jax.random.randint(k_seq, (B, MAX_LEN), 1, NUM_ITEMS,
                                  dtype=jnp.int32)
    target = jax.random.randint(k_tgt, (B,), 1, NUM_ITEMS, dtype=jnp.int32)
    data_dict = {"item_seq": item_seq, "target": target,
                 "seq_len": jnp.full((B,), MAX_LEN, jnp.int32)}

    losses = {}
    for loss_type in ("CE", "BPR", "BCE"):
        model = AbstractRecommenderPallas(NUM_ITEMS, loss_type, MAX_LEN)
        losses[loss_type] = jax.block_until_ready(
            model.get_loss(k_neg, data_dict, logits))

    # ---- pure-JAX references ---------------------------------------------- #
    ref_ce = jnp.mean(jax.nn.logsumexp(logits, axis=-1)
                      - jnp.take_along_axis(logits, target[:, None], -1)[:, 0])
    sampler = AbstractRecommenderPallas(NUM_ITEMS, "BPR", MAX_LEN)
    neg = sampler.get_negative_items(k_neg, item_seq, target, 1)   # same key/path
    pos_s = jnp.take_along_axis(logits, target[:, None], -1)
    neg_s = jnp.take_along_axis(logits, neg, -1)
    ref_bpr = -jnp.mean(jax.nn.log_sigmoid(pos_s - neg_s))
    ref_bce = -jnp.mean(jax.nn.log_sigmoid(pos_s) + jax.nn.log_sigmoid(-neg_s))

    assert jnp.allclose(losses["CE"], ref_ce, atol=1e-5), (losses["CE"], ref_ce)
    assert jnp.allclose(losses["BPR"], ref_bpr, atol=1e-5), (losses["BPR"], ref_bpr)
    assert jnp.allclose(losses["BCE"], ref_bce, atol=1e-5), (losses["BCE"], ref_bce)

    # native-dtype streaming path: CE on bf16 logits (tile_b rounds up to 16,
    # exercising the cdiv-padded batch path); upcast happens in-kernel.
    ce_bf16 = AbstractRecommenderPallas(NUM_ITEMS, "CE", MAX_LEN).get_loss(
        k_neg, data_dict, logits.astype(jnp.bfloat16))
    ce_bf16 = jax.block_until_ready(ce_bf16)
    assert jnp.allclose(ce_bf16, ref_ce, atol=5e-2), (ce_bf16, ref_ce)

    print("KERNEL_OK")
</pallas_src>

<mosaic_0001>
module attributes {stable_mosaic.version = 11 : i64} {
  func.func @_ce_lse_kernel(%arg0: i32, %arg1: i32, %arg2: memref<8x1xf32, #tpu.memory_space<vmem>>, %arg3: memref<8x128xf32, #tpu.memory_space<vmem>>, %arg4: memref<8x1xf32, #tpu.memory_space<vmem>>, %arg5: memref<8x1xf32, #tpu.memory_space<vmem>>, %arg6: memref<8x1xf32, #tpu.memory_space<vmem>>) attributes {dimension_semantics = [#tpu.dimension_semantics<parallel>, #tpu.dimension_semantics<arbitrary>], iteration_bounds = array<i64: 1, 3>, scalar_prefetch = 0 : i64, scratch_operands = 2 : i64, tpu.core_type = #tpu.core_type<tc>, window_params = [{transform_indices = @transform_0, window_bounds = array<i64: 8, 1>}, {transform_indices = @transform_1, window_bounds = array<i64: 8, 128>}, {transform_indices = @transform_2, window_bounds = array<i64: 8, 1>}]} {
    %c0_i32 = arith.constant 0 : i32
    %0 = arith.cmpi eq, %arg1, %c0_i32 : i32
    %1 = arith.extui %0 : i1 to i32
    %c0_i32_0 = arith.constant 0 : i32
    %2 = arith.cmpi ne, %1, %c0_i32_0 : i32
    scf.if %2 {
      %cst_14 = arith.constant 0xFF800000 : f32
      %24 = vector.broadcast %cst_14 : f32 to vector<8x1xf32>
      %c0_15 = arith.constant 0 : index
      %c0_16 = arith.constant 0 : index
      %25 = vector.load %arg5[%c0_15, %c0_16] : memref<8x1xf32, #tpu.memory_space<vmem>>, vector<8x1xf32>
      tpu.vector_store %arg5[%c0_15, %c0_16], %24 {strides = array<i32>} : memref<8x1xf32, #tpu.memory_space<vmem>>, vector<8x1xf32>,
      %cst_17 = arith.constant 0.000000e+00 : f32
      %26 = vector.broadcast %cst_17 : f32 to vector<8x1xf32>
      %c0_18 = arith.constant 0 : index
      %c0_19 = arith.constant 0 : index
      %27 = vector.load %arg6[%c0_18, %c0_19] : memref<8x1xf32, #tpu.memory_space<vmem>>, vector<8x1xf32>
      tpu.vector_store %arg6[%c0_18, %c0_19], %26 {strides = array<i32>} : memref<8x1xf32, #tpu.memory_space<vmem>>, vector<8x1xf32>,
    } else {
    }
    %c0 = arith.constant 0 : index
    %c0_1 = arith.constant 0 : index
    %3 = vector.load %arg3[%c0, %c0_1] : memref<8x128xf32, #tpu.memory_space<vmem>>, vector<8x128xf32>
    %c0_2 = arith.constant 0 : index
    %c0_3 = arith.constant 0 : index
    %4 = vector.load %arg5[%c0_2, %c0_3] : memref<8x1xf32, #tpu.memory_space<vmem>>, vector<8x1xf32>
    %cst = arith.constant dense<0xFF800000> : vector<8xf32>
    %5 = vector.multi_reduction <maximumf>, %3, %cst [1] : vector<8x128xf32> to vector<8xf32>
    %6 = vector.shape_cast %5 : vector<8xf32> to vector<8x1xf32>
    %7 = arith.maximumf %4, %6 : vector<8x1xf32>
    %c0_4 = arith.constant 0 : index
    %c0_5 = arith.constant 0 : index
    %8 = vector.load %arg5[%c0_4, %c0_5] : memref<8x1xf32, #tpu.memory_space<vmem>>, vector<8x1xf32>
    %9 = arith.subf %8, %7 : vector<8x1xf32>
    %10 = math.exp %9 : vector<8x1xf32>
    %c0_6 = arith.constant 0 : index
    %c0_7 = arith.constant 0 : index
    %11 = vector.load %arg6[%c0_6, %c0_7] : memref<8x1xf32, #tpu.memory_space<vmem>>, vector<8x1xf32>
    %12 = arith.mulf %10, %11 : vector<8x1xf32>
    %13 = vector.broadcast %7 : vector<8x1xf32> to vector<8x128xf32>
    %14 = arith.subf %3, %13 : vector<8x128xf32>
    %15 = math.exp %14 : vector<8x128xf32>
    %cst_8 = arith.constant dense<0.000000e+00> : vector<8xf32>
    %16 = vector.multi_reduction <add>, %15, %cst_8 [1] : vector<8x128xf32> to vector<8xf32>
    %17 = vector.shape_cast %16 : vector<8xf32> to vector<8x1xf32>
    %18 = arith.addf %12, %17 : vector<8x1xf32>
    %c0_9 = arith.constant 0 : index
    %c0_10 = arith.constant 0 : index
    %19 = vector.load %arg6[%c0_9, %c0_10] : memref<8x1xf32, #tpu.memory_space<vmem>>, vector<8x1xf32>
    tpu.vector_store %arg6[%c0_9, %c0_10], %18 {strides = array<i32>} : memref<8x1xf32, #tpu.memory_space<vmem>>, vector<8x1xf32>,
    %c0_11 = arith.constant 0 : index
    %c0_12 = arith.constant 0 : index
    %20 = vector.load %arg5[%c0_11, %c0_12] : memref<8x1xf32, #tpu.memory_space<vmem>>, vector<8x1xf32>
    tpu.vector_store %arg5[%c0_11, %c0_12], %7 {strides = array<i32>} : memref<8x1xf32, #tpu.memory_space<vmem>>, vector<8x1xf32>,
    %c2_i32 = arith.constant 2 : i32
    %21 = arith.cmpi eq, %arg1, %c2_i32 : i32
    %22 = arith.extui %21 : i1 to i32
    %c0_i32_13 = arith.constant 0 : i32
    %23 = arith.cmpi ne, %22, %c0_i32_13 : i32
    scf.if %23 {
      %c0_14 = arith.constant 0 : index
      %c0_15 = arith.constant 0 : index
      %24 = vector.load %arg5[%c0_14, %c0_15] : memref<8x1xf32, #tpu.memory_space<vmem>>, vector<8x1xf32>
      %c0_16 = arith.constant 0 : index
      %c0_17 = arith.constant 0 : index
      %25 = vector.load %arg6[%c0_16, %c0_17] : memref<8x1xf32, #tpu.memory_space<vmem>>, vector<8x1xf32>
      %26 = math.log %25 : vector<8x1xf32>
      %27 = arith.addf %24, %26 : vector<8x1xf32>
      %c0_18 = arith.constant 0 : index
      %c0_19 = arith.constant 0 : index
      %28 = vector.load %arg2[%c0_18, %c0_19] : memref<8x1xf32, #tpu.memory_space<vmem>>, vector<8x1xf32>
      %29 = arith.subf %27, %28 : vector<8x1xf32>
      %c0_20 = arith.constant 0 : index
      %c0_21 = arith.constant 0 : index
      %30 = vector.load %arg4[%c0_20, %c0_21] : memref<8x1xf32, #tpu.memory_space<vmem>>, vector<8x1xf32>
      tpu.vector_store %arg4[%c0_20, %c0_21], %29 {strides = array<i32>} : memref<8x1xf32, #tpu.memory_space<vmem>>, vector<8x1xf32>,
    } else {
    }
    return
  }
  func.func @transform_0(%arg0: i32, %arg1: i32) -> (i32, i32) {
    %c0_i32 = arith.constant 0 : i32
    %c0_i32_0 = arith.constant 0 : i32
    return %arg0, %c0_i32 : i32, i32
  }
  func.func @transform_1(%arg0: i32, %arg1: i32) -> (i32, i32) {
    %c0_i32 = arith.constant 0 : i32
    return %arg0, %arg1 : i32, i32
  }
  func.func @transform_2(%arg0: i32, %arg1: i32) -> (i32, i32) {
    %c0_i32 = arith.constant 0 : i32
    %c0_i32_0 = arith.constant 0 : i32
    return %arg0, %c0_i32 : i32, i32
  }
}

</mosaic_0001>

<llo_original>
// kernel: tpu_custom_call.1
$region0: #{tpu_custom_call.1}
  #allocation0 [shape = 'u32[]', space=smem, size = 0x4, offset = 0x4, fixed_abs, tag = 'smem constant byte address 0x4 - core index']
  #allocation1 [shape = 'u32[72,128]{1,0:T(1,128)}', space=vmem, size = 0x9000, scoped, tag = 'internal scratch']
  #allocation2 [shape = 'f32[8,1]{1,0:T(8,128)}', space=vmem, size = 0x1000, scoped, tag = 'scratch operand']
  #allocation3 [shape = 'f32[8,1]{1,0:T(8,128)}', space=vmem, size = 0x1000, scoped, tag = 'scratch operand']
  %s0 = inlined_call_operand.vmem [shape: f32[8,1], index: 0, kind: input, shape index: {}]
  %s1 = inlined_call_operand.hbm [shape: f32[8,384], index: 1, kind: input, shape index: {}]
  %s2 = inlined_call_operand.vmem [shape: f32[8,1], index: 2, kind: output, shape index: {}]
  %s3 = sld [smem:[#allocation0]]
  $region53: #{tpu_custom_call.1} parent=0
    _
  %s5 = ssub.s32 1, %s3
  %s6 = scalar_select 0, %s5, %s3
  $region1: #{tpu_custom_call.1} parent=0
    #allocation4 [shape = 'u8[8192]{0}', space=vmem, size = 0x2000, scoped, tag = 'input window, operand 1']
    #allocation5 [shape = 's32[2]{0}', space=sflag, size = 0x8, scoped, tag = 'scoped memory for tpu_custom_call.1']
    %7 = vsyncpa [#allocation5], 0
    %s8 = scalar_lea.sflag [#allocation5], 1
    %9 = vsyncpa %s8, 0
    loop: start=0, step=1, limit=5
    $region2: #{tpu_custom_call.1} parent=1 // loop_pre_header
      _
    $region3: #{tpu_custom_call.1} parent=1 // loop_header
      %s11 = sphi 0, %s15
      %p12 = scmp.ge.s32.totalorder %s11, 5
      %s18 = sphi 0, %s30
      %s19 = sphi 0, %s26
      %s20 = sphi 0, %s18
      %s21 = sphi 0, %s19
      %s22 = sphi 0, %s20
      %s23 = sphi 0, %s21
      %s33 = sphi 0, %s35
      %s36 = sphi 0, %s33
      %s37 = sphi 0, %s36
      %s53 = sphi 0, %s37
      %s61 = sphi 0, %s63
      %s64 = sphi 0, %s61
      %s65 = sphi 0, %s64
      %s81 = sphi 0, %s65
      %s87 = sphi 0, %s89
      %s90 = sphi 0, %s87
      %s91 = sphi 0, %s90
      %s107 = sphi 0, %s91
    $region4: #{tpu_custom_call.1} parent=1 // loop_header_branch
      %14 = sbr.rel (%p12) target = $region8
    $region5: #{tpu_custom_call.1} parent=1 // loop_body
      %s16 = ssub.s32 %s11, 1
      %s17 = ssub.s32 %s11, 2
      %s24 = sadd.s32 1, %s19
      %p25 = scmp.ge.s32.totalorder %s24, 3
      %s26 = scalar_select %p25, 0, %s24
      %s27 = sadd.s32 1, %s18
      %s28 = scalar_select %p25, %s27, %s18
      %p29 = scmp.ge.s32.totalorder %s28, 1
      %s30 = scalar_select %p29, 0, %s28
      %s31 = ssub.s32 %s18, %s30
      %p32 = scmp.eq.s32.totalorder %s31, 0
      %s34 = sadd.s32 %s33, 1
      %s35 = scalar_select %p32, %s33, %s34
      %p38 = pneg %p32
      %p39 = scmp.eq.s32.totalorder %s11, 2
      %p40 = por %p38, %p39
      %p41 = scmp.ne.s32.totalorder %s33, %s36
      %p42 = scmp.eq.s32.totalorder %s11, 0
      %p43 = por %p41, %p42
      %p44 = scmp.ne.s32.totalorder %s33, %s36
      %p45 = scmp.eq.s32.totalorder %s16, 2
      %p46 = por %p44, %p45
      %p47 = scmp.ne.s32.totalorder %s36, %s37
      %p48 = scmp.eq.s32.totalorder %s16, 0
      %p49 = por %p47, %p48
      %p50 = scmp.ne.s32.totalorder %s36, %s37
      %p51 = scmp.eq.s32.totalorder %s17, 2
      %p52 = por %p50, %p51
      %p54 = scmp.ne.s32.totalorder %s37, %s53
      %p55 = scmp.eq.s32.totalorder %s17, 0
      %p56 = por %p54, %p55
      %s57 = ssub.s32 %s18, %s30
      %s58 = ssub.s32 %s19, %s26
      %s59 = sor.u32 %s57, %s58
      %p60 = scmp.eq.s32.totalorder %s59, 0
      %s62 = sadd.s32 %s61, 1
      %s63 = scalar_select %p60, %s61, %s62
      %p66 = pneg %p60
      %p67 = scmp.eq.s32.totalorder %s11, 2
      %p68 = por %p66, %p67
      %p69 = scmp.ne.s32.totalorder %s61, %s64
      %p70 = scmp.eq.s32.totalorder %s11, 0
      %p71 = por %p69, %p70
      %p72 = scmp.ne.s32.totalorder %s61, %s64
      %p73 = scmp.eq.s32.totalorder %s16, 2
      %p74 = por %p72, %p73
      %p75 = scmp.ne.s32.totalorder %s64, %s65
      %p76 = scmp.eq.s32.totalorder %s16, 0
      %p77 = por %p75, %p76
      %p78 = scmp.ne.s32.totalorder %s64, %s65
      %p79 = scmp.eq.s32.totalorder %s17, 2
      %p80 = por %p78, %p79
      %p82 = scmp.ne.s32.totalorder %s65, %s81
      %p83 = scmp.eq.s32.totalorder %s17, 0
      %p84 = por %p82, %p83
      %s85 = ssub.s32 %s18, %s30
      %p86 = scmp.eq.s32.totalorder %s85, 0
      %s88 = sadd.s32 %s87, 1
      %s89 = scalar_select %p86, %s87, %s88
      %p92 = pneg %p86
      %p93 = scmp.eq.s32.totalorder %s11, 2
      %p94 = por %p92, %p93
      %p95 = scmp.ne.s32.totalorder %s87, %s90
      %p96 = scmp.eq.s32.totalorder %s11, 0
      %p97 = por %p95, %p96
      %p98 = scmp.ne.s32.totalorder %s87, %s90
      %p99 = scmp.eq.s32.totalorder %s16, 2
      %p100 = por %p98, %p99
      %p101 = scmp.ne.s32.totalorder %s90, %s91
      %p102 = scmp.eq.s32.totalorder %s16, 0
      %p103 = por %p101, %p102
      %p104 = scmp.ne.s32.totalorder %s90, %s91
      %p105 = scmp.eq.s32.totalorder %s17, 2
      %p106 = por %p104, %p105
      %p108 = scmp.ne.s32.totalorder %s91, %s107
      %p109 = scmp.eq.s32.totalorder %s17, 0
      %p110 = por %p108, %p109
      %p111 = scmp.le.s32.totalorder 1, %s11
      %p112 = scmp.lt.s32.totalorder %s11, 4
      %p113 = pnand %p111, %p112
      %p114 = pneg %p113
      // Predicated region
      $region9: #{tpu_custom_call.1} parent=5 // pred_check
        _
      $region10: #{tpu_custom_call.1} parent=5 // pred_check_branch
        %116 = sbr.rel (%p113) target = $region12
      $region11: #{tpu_custom_call.1} parent=5 // pred_region
        %s117 = ssub.s32 %s11, 1
        // Predicated region
        $region13: #{tpu_custom_call.1} parent=11 // pred_check
          %p118 = pneg %p49
        $region14: #{tpu_custom_call.1} parent=11 // pred_check_branch
          %120 = sbr.rel (%p118) target = $region16
        $region15: #{tpu_custom_call.1} parent=11 // pred_region
          %p121 = scmp.lt.s32.totalorder %s20, 0
          %s122 = scalar_select %p121, %s20, 0
          %s123 = smul.addr %s122, 8
          %s124 = scalar_lea.vmem %s0, %s123
        $region16: #{tpu_custom_call.1} parent=11 // pred_fallthru
          _
      $region12: #{tpu_custom_call.1} parent=5 // pred_fallthru
        _
      %p125 = scmp.lt.s32.totalorder %s11, 3
      // Predicated region
      $region17: #{tpu_custom_call.1} parent=5 // pred_check
        %p126 = pneg %p125
      $region18: #{tpu_custom_call.1} parent=5 // pred_check_branch
        %128 = sbr.rel (%p126) target = $region20
      $region19: #{tpu_custom_call.1} parent=5 // pred_region
        // Predicated region
        $region21: #{tpu_custom_call.1} parent=19 // pred_check
          %p129 = pneg %p71
        $region22: #{tpu_custom_call.1} parent=19 // pred_check_branch
          %131 = sbr.rel (%p129) target = $region24
        $region23: #{tpu_custom_call.1} parent=19 // pred_region
          %s132 = sand.u32 %s61, 1
          %s133 = scalar_lea.sflag [#allocation5], %s132
          %s134 = sand.u32 %s61, 1
          %s135 = smul.addr %s134, 8
          %s136 = scalar_lea.vmem [#allocation4], %s135
          %138 = vsyncadd %s133, 0
          %s139 = smul.addr %s18, 3
          %s140 = sadd.s32 %s19, %s139
          %s141 = smul.addr %s140, 8
          %s142 = scalar_lea.hbm %s1, %s141
          %s144 = sshll.u32 %s142, 4
          %s145 = int_to_ptr.hbm [resolvable:$true] %s144
          %s146 = sshll.u32 %s136, 4
          %s147 = int_to_ptr.vmem [resolvable:$true] %s146
          %149 = dma.hbm_to_vmem [thread:$0]  %s145, 128, %s147, %s133
        $region24: #{tpu_custom_call.1} parent=19 // pred_fallthru
          _
      $region20: #{tpu_custom_call.1} parent=5 // pred_fallthru
        _
      %p150 = scmp.le.s32.totalorder 1, %s11
      %p151 = scmp.lt.s32.totalorder %s11, 4
      %p152 = pnand %p150, %p151
      %p153 = pneg %p152
      // Predicated region
      $region25: #{tpu_custom_call.1} parent=5 // pred_check
        _
      $region26: #{tpu_custom_call.1} parent=5 // pred_check_branch
        %155 = sbr.rel (%p152) target = $region28
      $region27: #{tpu_custom_call.1} parent=5 // pred_region
        %s156 = ssub.s32 %s11, 1
        %s157 = sand.u32 %s64, 1
        %s158 = scalar_lea.sflag [#allocation5], %s157
        %s159 = sand.u32 %s64, 1
        %s160 = smul.addr %s159, 8
        %s161 = scalar_lea.vmem [#allocation4], %s160
        // Predicated region
        $region29: #{tpu_custom_call.1} parent=27 // pred_check
          %p162 = pneg %p77
        $region30: #{tpu_custom_call.1} parent=27 // pred_check_branch
          %164 = sbr.rel (%p162) target = $region32
        $region31: #{tpu_custom_call.1} parent=27 // pred_region
          %166 = dma.done %s158, 128
        $region32: #{tpu_custom_call.1} parent=27 // pred_fallthru
          _
        %p167 = scmp.lt.s32.totalorder %s20, 0
        %s168 = scalar_select %p167, %s20, 0
        %s169 = smul.addr %s168, 8
        %s170 = scalar_lea.vmem %s0, %s169
        %p171 = pneg %p49
        %p172 = pneg %p46
        %s173 = sand.u32 %s64, 1
        %s174 = scalar_lea.sflag [#allocation5], %s173
        %s175 = sand.u32 %s64, 1
        %s176 = smul.addr %s175, 8
        %s177 = scalar_lea.vmem [#allocation4], %s176
        %p178 = pneg %p77
        %p179 = pneg %p74
        %p180 = pneg %p103
        %p181 = pneg %p100
        %p182 = scmp.lt.s32.totalorder %s20, 0
        %s183 = scalar_select %p182, %s20, 0
        %s184 = smul.addr %s183, 8
        %s185 = scalar_lea.vmem %s2, %s184
        %p186 = scmp.lt.s32.totalorder %s20, 0
        %s187 = scalar_select %p186, %s20, 0
        %s188 = smul.addr %s187, 8
        %s189 = scalar_lea.vmem %s0, %s188
        %p190 = scmp.lt.s32.totalorder %s20, 0
        %s191 = scalar_select %p190, %s20, 0
        %s192 = smul.addr %s191, 8
        %s193 = scalar_lea.vmem %s2, %s192
        %p194 = scmp.eq.s32.totalorder %s21, 0
        // Predicated region
        $region33: #{tpu_custom_call.1} parent=27 // pred_check
          %p195 = pneg %p194
        $region34: #{tpu_custom_call.1} parent=27 // pred_check_branch
          %197 = sbr.rel (%p195) target = $region36
        $region35: #{tpu_custom_call.1} parent=27 // pred_region
          %vm198 = vcmask 7168
          %199 = vst.msk [vmem:[#allocation2] sm:$0xff] %vm198, -inf
          %200 = vst.msk [vmem:[#allocation3] sm:$0xff] %vm198, 0.0
        $region36: #{tpu_custom_call.1} parent=27 // pred_fallthru
          _
        %v201 = vld [vmem:[%s161] sm:$0xff]
        %v202 = vld [vmem:[#allocation2] sm:$0xff]
        %203 = vmax.xlane.f32.xlu0 %v201
        %v204 = vpop.xlane.xlu0 %203
        %v205 = vmax.f32 %v202, %v204
        %v206 = vsub.f32 %v202, %v205
        %v207 = vmul.f32 %v206, 1.442695
        %v208 = vpow.pop %v207
        %v209 = vld [vmem:[#allocation3] sm:$0xff]
        %v210 = vmul.f32 %v208, %v209
        %212 = vset.pattern.permute.xlu0 0
        %213 = vperm.xlu0 %212, %v205
        %v214 = vpop.permute.xlu0 %213
        %v216 = vsub.f32 %v201, %v214
        %v217 = vmul.f32 %v216, 1.442695
        %v218 = vpow.pop %v217
        %219 = vadd.xlane.f32.xlu0 %v218
        %v220 = vpop.xlane.xlu0 %219
        %v221 = vadd.f32 %v210, %v220
        %vm222 = vcmask 7168
        %223 = vst.msk [vmem:[#allocation3] sm:$0xff] %vm222, %v221
        %224 = vst.msk [vmem:[#allocation2] sm:$0xff] %vm222, %v205
        %p225 = scmp.eq.s32.totalorder %s21, 2
        // Predicated region
        $region37: #{tpu_custom_call.1} parent=27 // pred_check
          %p226 = pneg %p225
        $region38: #{tpu_custom_call.1} parent=27 // pred_check_branch
          %228 = sbr.rel (%p226) target = $region40
        $region39: #{tpu_custom_call.1} parent=27 // pred_region
          %v229 = vld [vmem:[#allocation2] sm:$0xff]
          %v230 = vld [vmem:[#allocation3] sm:$0xff]
          %v231 = vlog2.pop %v230
          %v232 = vmul.f32 %v231, 0.6931472
          %v233 = vadd.f32 %v229, %v232
          %v234 = vld [vmem:[%s189] sm:$0xff]
          %v235 = vsub.f32 %v233, %v234
          %236 = vst.msk [vmem:[%s193] sm:$0xff] %vm222, %v235
        $region40: #{tpu_custom_call.1} parent=27 // pred_fallthru
          _
        %p237 = scmp.lt.s32.totalorder %s20, 0
        %s238 = scalar_select %p237, %s20, 0
        %s239 = smul.addr %s238, 8
        %s240 = scalar_lea.vmem %s2, %s239
        // Predicated region
        $region41: #{tpu_custom_call.1} parent=27 // pred_check
          %p241 = pneg %p100
        $region42: #{tpu_custom_call.1} parent=27 // pred_check_branch
          %243 = sbr.rel (%p241) target = $region44
        $region43: #{tpu_custom_call.1} parent=27 // pred_region
          _
        $region44: #{tpu_custom_call.1} parent=27 // pred_fallthru
          _
        // Predicated region
        $region45: #{tpu_custom_call.1} parent=27 // pred_check
          %p244 = pneg %p100
        $region46: #{tpu_custom_call.1} parent=27 // pred_check_branch
          %246 = sbr.rel (%p244) target = $region48
        $region47: #{tpu_custom_call.1} parent=27 // pred_region
          %p247 = scmp.lt.s32.totalorder %s20, 0
          %s248 = scalar_select %p247, %s20, 0
          %s249 = smul.addr %s248, 8
          %s250 = scalar_lea.vmem %s2, %s249
        $region48: #{tpu_custom_call.1} parent=27 // pred_fallthru
          _
      $region28: #{tpu_custom_call.1} parent=5 // pred_fallthru
        _
      %p251 = scmp.le.s32.totalorder 2, %s11
      // Predicated region
      $region49: #{tpu_custom_call.1} parent=5 // pred_check
        %p252 = pneg %p251
      $region50: #{tpu_custom_call.1} parent=5 // pred_check_branch
        %254 = sbr.rel (%p252) target = $region52
      $region51: #{tpu_custom_call.1} parent=5 // pred_region
        %s255 = ssub.s32 %s11, 2
      $region52: #{tpu_custom_call.1} parent=5 // pred_fallthru
        _
    $region6: #{tpu_custom_call.1} parent=1 // loop_footer
      %s15 = sadd.s32 1, %s11
    $region7: #{tpu_custom_call.1} parent=1 // loop_footer_branch
      %10 = sbr.rel target = $region3
    $region8: #{tpu_custom_call.1} parent=1 // loop_exit
      _
    %256 = vsyncpa [#allocation5], 1
    %s257 = scalar_lea.sflag [#allocation5], 1
    %258 = vsyncpa %s257, 1

</llo_original>
